<compile_context>
chip_gen: v6e
topology: v6e:2x2x1
jax: 0.10.0
libtpu: 0.0.40
codegen_flags: <defaults>
</compile_context>

<pallas_src>
import jax
import jax.numpy as jnp
from jax.experimental import pallas as pl
from jax.experimental.pallas import tpu as pltpu

LANE = 128      # lane width of a vreg (fast axis)
SUBLANE = 8     # sublane count of a vreg (slow axis)


def _round_up(x: int, m: int) -> int:
    return ((x + m - 1) // m) * m


def _linear_qnet_kernel(x_ref, w1_ref, b1_ref, w2_ref, b2_ref, out_ref):
    # Layer 1: h = relu(x @ W1 + b1).  x is (tile_b, input_size) at its true
    # width; W1 is (input_size, hid_p) with the hidden dim zero-padded to a
    # lane multiple, so h is lane-dense and the padded hidden lanes are exactly
    # 0 after bias(0)+ReLU.
    h = jnp.dot(x_ref[...], w1_ref[...], preferred_element_type=jnp.float32)
    h = jnp.maximum(h + b1_ref[...], 0.0)           # b1 is (1, hid_p): broadcasts over batch
    # Layer 2: y = h @ W2 + b2.  W2's padded hidden rows are zero, so padded
    # hidden lanes contribute nothing; output is stored at its true width.
    y = jnp.dot(h, w2_ref[...], preferred_element_type=jnp.float32)
    out_ref[...] = (y + b2_ref[...]).astype(out_ref.dtype)


def prepare_linear_qnet_params(w1_pt, b1, w2_pt, b2):
    """One-time layout prep: PyTorch [out,in] weights -> [in,out] kernel weights.

    Only the *hidden* (internal) dimension is zero-padded to a lane multiple;
    the input and output widths are kept at their true sizes so the streamed
    HBM traffic is exactly what the math needs.  Zero padding keeps the padded
    hidden lanes exactly 0 through bias+ReLU, so the result is exact.
    Returns (w1p, b1p, w2p, b2p).
    """
    hidden_size, input_size = w1_pt.shape
    output_size = w2_pt.shape[0]
    hid_p = _round_up(hidden_size, LANE)

    w1p = jnp.zeros((input_size, hid_p), jnp.float32).at[:, :hidden_size].set(w1_pt.T)
    b1p = jnp.zeros((1, hid_p), jnp.float32).at[0, :hidden_size].set(b1)
    w2p = jnp.zeros((hid_p, output_size), jnp.float32).at[:hidden_size, :].set(w2_pt.T)
    b2p = jnp.asarray(b2, jnp.float32).reshape(1, output_size)
    return w1p, b1p, w2p, b2p


def _qnet_jnp(x, w1p, b1p, w2p, b2p):
    h = jnp.maximum(x @ w1p + b1p, 0.0)
    return h @ w2p + b2p


def linear_qnet_forward(x, w1p, b1p, w2p, b2p, *, tile_b=2048, min_pallas_batch=64):
    """Forward pass.  x: [B, input_size].  Params from prepare_linear_qnet_params.

    Returns [B, output_size] f32 (== relu(x@W1+b1) @ W2 + b2 of the original net).
    """
    B, input_size = x.shape
    in_w, hid_p = w1p.shape
    output_size = w2p.shape[1]
    assert input_size == in_w, "x feature width does not match prepared weights"
    x = x.astype(jnp.float32)

    if B == 0:
        return jnp.zeros((0, output_size), jnp.float32)

    if B <= min_pallas_batch:
        # Inference-sized batch: pure launch/DMA overhead regime; XLA fuses the
        # two tiny matmuls more cheaply than a pallas_call.
        return _qnet_jnp(x, w1p, b1p, w2p, b2p)

    # Batch tile: big enough to amortize the ~0.35 us per-grid-step cost, but
    # capped at ceil(B/2) (rounded up to a sublane multiple) so large batches
    # always give >= 2 grid steps for the "parallel" axis (megacore on v7x;
    # harmless on v5e/v6e).  The last block may be ragged: Pallas masks the
    # out-of-range writeback, and rows are independent, so no host-side pad or
    # post-slice passes are needed.
    tile_b = min(tile_b, max(SUBLANE, _round_up(pl.cdiv(B, 2), SUBLANE)))
    grid = (pl.cdiv(B, tile_b),)

    return pl.pallas_call(
        _linear_qnet_kernel,
        out_shape=jax.ShapeDtypeStruct((B, output_size), jnp.float32),
        grid=grid,
        in_specs=[
            # x streams through, one batch tile per grid step (true width: the
            # block last dim equals the full array last dim -> dense HBM DMA).
            pl.BlockSpec((tile_b, input_size), lambda i: (i, 0)),
            # Weights / biases: same block every step -> stay VMEM-resident.
            pl.BlockSpec((input_size, hid_p), lambda i: (0, 0)),
            pl.BlockSpec((1, hid_p), lambda i: (0, 0)),
            pl.BlockSpec((hid_p, output_size), lambda i: (0, 0)),
            pl.BlockSpec((1, output_size), lambda i: (0, 0)),
        ],
        # Output at its true width: again full-last-dim block -> dense rows.
        out_specs=pl.BlockSpec((tile_b, output_size), lambda i: (i, 0)),
        compiler_params=pltpu.CompilerParams(
            dimension_semantics=("parallel",),
        ),
    )(x, w1p, b1p, w2p, b2p)


def init_linear_qnet_params(key, input_size, hidden_size, output_size):
    """Deterministic init matching PyTorch nn.Linear shapes ([out, in] weights)."""
    k1, k2, k3, k4 = jax.random.split(key, 4)
    bound1 = 1.0 / (input_size ** 0.5)
    bound2 = 1.0 / (hidden_size ** 0.5)
    w1_pt = jax.random.uniform(k1, (hidden_size, input_size), jnp.float32, -bound1, bound1)
    b1 = jax.random.uniform(k2, (hidden_size,), jnp.float32, -bound1, bound1)
    w2_pt = jax.random.uniform(k3, (output_size, hidden_size), jnp.float32, -bound2, bound2)
    b2 = jax.random.uniform(k4, (output_size,), jnp.float32, -bound2, bound2)
    return w1_pt, b1, w2_pt, b2


if __name__ == "__main__":
    # Snake-game-like Q-net: 11 state features, 32 hidden, 3 actions.
    input_size, hidden_size, output_size = 11, 32, 3

    key = jax.random.PRNGKey(0)
    kx1, kx2, kp = jax.random.split(key, 3)

    w1_pt, b1, w2_pt, b2 = init_linear_qnet_params(kp, input_size, hidden_size, output_size)
    # One-time layout prep (transpose + hidden-dim padding), outside the hot path.
    params = prepare_linear_qnet_params(w1_pt, b1, w2_pt, b2)

    def ref_forward(x):
        return jnp.maximum(x @ w1_pt.T + b1, 0.0) @ w2_pt.T + b2

    # Case 1: tiny inference-sized batch, forced through the Pallas kernel
    # (min_pallas_batch=0) to exercise the single-tile path.
    x_small = jax.random.normal(kx1, (8, input_size), jnp.float32)
    out_small = jax.block_until_ready(
        linear_qnet_forward(x_small, *params, min_pallas_batch=0))
    assert out_small.shape == (8, output_size)
    assert jnp.allclose(out_small, ref_forward(x_small), atol=1e-5, rtol=1e-5)

    # The default path at this size takes the jnp fast path; must agree.
    out_small_fast = jax.block_until_ready(linear_qnet_forward(x_small, *params))
    assert jnp.allclose(out_small_fast, out_small, atol=1e-5, rtol=1e-5)

    # Case 2: ragged replay-buffer-like batch -> Pallas with a 2-step batch grid
    # (ragged last block, masked writeback; no host-side pad or slice passes).
    x_big = jax.random.normal(kx2, (300, input_size), jnp.float32)
    out_big = jax.block_until_ready(linear_qnet_forward(x_big, *params))
    assert out_big.shape == (300, output_size)
    assert jnp.allclose(out_big, ref_forward(x_big), atol=1e-5, rtol=1e-5)

    # TODO(synk): LinearQNet.save() is file I/O with no kernel equivalent; omitted.
    print("KERNEL_OK")
</pallas_src>

<mosaic_0001>
module attributes {stable_mosaic.version = 11 : i64} {
  func.func @_linear_qnet_kernel(%arg0: i32, %arg1: memref<8x11xf32, #tpu.memory_space<vmem>>, %arg2: memref<11x128xf32, #tpu.memory_space<vmem>>, %arg3: memref<1x128xf32, #tpu.memory_space<vmem>>, %arg4: memref<128x3xf32, #tpu.memory_space<vmem>>, %arg5: memref<1x3xf32, #tpu.memory_space<vmem>>, %arg6: memref<8x3xf32, #tpu.memory_space<vmem>>) attributes {dimension_semantics = [#tpu.dimension_semantics<parallel>], iteration_bounds = array<i64: 1>, scalar_prefetch = 0 : i64, scratch_operands = 0 : i64, tpu.core_type = #tpu.core_type<tc>, window_params = [{transform_indices = @transform_0, window_bounds = array<i64: 8, 11>}, {pipeline_mode = #tpu.pipeline_mode<synchronous>, transform_indices = @transform_1, window_bounds = array<i64: 11, 128>}, {pipeline_mode = #tpu.pipeline_mode<synchronous>, transform_indices = @transform_2, window_bounds = array<i64: 1, 128>}, {pipeline_mode = #tpu.pipeline_mode<synchronous>, transform_indices = @transform_3, window_bounds = array<i64: 128, 3>}, {pipeline_mode = #tpu.pipeline_mode<synchronous>, transform_indices = @transform_4, window_bounds = array<i64: 1, 3>}, {transform_indices = @transform_5, window_bounds = array<i64: 8, 3>}]} {
    %c0 = arith.constant 0 : index
    %c0_0 = arith.constant 0 : index
    %0 = vector.load %arg1[%c0, %c0_0] : memref<8x11xf32, #tpu.memory_space<vmem>>, vector<8x11xf32>
    %c0_1 = arith.constant 0 : index
    %c0_2 = arith.constant 0 : index
    %1 = vector.load %arg2[%c0_1, %c0_2] : memref<11x128xf32, #tpu.memory_space<vmem>>, vector<11x128xf32>
    %cst = arith.constant dense<0.000000e+00> : vector<8x128xf32>
    %2 = tpu.matmul %0, %1, %cst {dimension_numbers = #tpu.dot_dimension_numbers<[1], [0], [0], [1], [0, 0, 1, 1], [], []>} : vector<8x11xf32>, vector<11x128xf32>, vector<8x128xf32> -> vector<8x128xf32>
    %c0_3 = arith.constant 0 : index
    %c0_4 = arith.constant 0 : index
    %3 = vector.load %arg3[%c0_3, %c0_4] : memref<1x128xf32, #tpu.memory_space<vmem>>, vector<1x128xf32>
    %4 = vector.broadcast %3 : vector<1x128xf32> to vector<8x128xf32>
    %5 = arith.addf %2, %4 : vector<8x128xf32>
    %cst_5 = arith.constant 0.000000e+00 : f32
    %6 = vector.broadcast %cst_5 : f32 to vector<8x128xf32>
    %7 = arith.maximumf %5, %6 : vector<8x128xf32>
    %c0_6 = arith.constant 0 : index
    %c0_7 = arith.constant 0 : index
    %8 = vector.load %arg4[%c0_6, %c0_7] : memref<128x3xf32, #tpu.memory_space<vmem>>, vector<128x3xf32>
    %cst_8 = arith.constant dense<0.000000e+00> : vector<8x3xf32>
    %9 = tpu.matmul %7, %8, %cst_8 {dimension_numbers = #tpu.dot_dimension_numbers<[1], [0], [0], [1], [0, 0, 1, 1], [], []>} : vector<8x128xf32>, vector<128x3xf32>, vector<8x3xf32> -> vector<8x3xf32>
    %c0_9 = arith.constant 0 : index
    %c0_10 = arith.constant 0 : index
    %10 = vector.load %arg5[%c0_9, %c0_10] : memref<1x3xf32, #tpu.memory_space<vmem>>, vector<1x3xf32>
    %11 = vector.broadcast %10 : vector<1x3xf32> to vector<8x3xf32>
    %12 = arith.addf %9, %11 : vector<8x3xf32>
    %c0_11 = arith.constant 0 : index
    %c0_12 = arith.constant 0 : index
    %13 = vector.load %arg6[%c0_11, %c0_12] : memref<8x3xf32, #tpu.memory_space<vmem>>, vector<8x3xf32>
    tpu.vector_store %arg6[%c0_11, %c0_12], %12 {strides = array<i32>} : memref<8x3xf32, #tpu.memory_space<vmem>>, vector<8x3xf32>,
    return
  }
  func.func @transform_0(%arg0: i32) -> (i32, i32) {
    %c0_i32 = arith.constant 0 : i32
    %c0_i32_0 = arith.constant 0 : i32
    return %arg0, %c0_i32 : i32, i32
  }
  func.func @transform_1(%arg0: i32) -> (i32, i32) {
    %c0_i32 = arith.constant 0 : i32
    %c0_i32_0 = arith.constant 0 : i32
    %c0_i32_1 = arith.constant 0 : i32
    return %c0_i32, %c0_i32_0 : i32, i32
  }
  func.func @transform_2(%arg0: i32) -> (i32, i32) {
    %c0_i32 = arith.constant 0 : i32
    %c0_i32_0 = arith.constant 0 : i32
    %c0_i32_1 = arith.constant 0 : i32
    return %c0_i32, %c0_i32_0 : i32, i32
  }
  func.func @transform_3(%arg0: i32) -> (i32, i32) {
    %c0_i32 = arith.constant 0 : i32
    %c0_i32_0 = arith.constant 0 : i32
    %c0_i32_1 = arith.constant 0 : i32
    return %c0_i32, %c0_i32_0 : i32, i32
  }
  func.func @transform_4(%arg0: i32) -> (i32, i32) {
    %c0_i32 = arith.constant 0 : i32
    %c0_i32_0 = arith.constant 0 : i32
    %c0_i32_1 = arith.constant 0 : i32
    return %c0_i32, %c0_i32_0 : i32, i32
  }
  func.func @transform_5(%arg0: i32) -> (i32, i32) {
    %c0_i32 = arith.constant 0 : i32
    %c0_i32_0 = arith.constant 0 : i32
    return %arg0, %c0_i32 : i32, i32
  }
}

</mosaic_0001>

<llo_original>
// kernel: tpu_custom_call.1
$region0: #{tpu_custom_call.1}
  #allocation0 [shape = 'u32[]', space=smem, size = 0x4, offset = 0x4, fixed_abs, tag = 'smem constant byte address 0x4 - core index']
  #allocation1 [shape = 'u32[144,128]{1,0:T(1,128)}', space=vmem, size = 0x12000, scoped, tag = 'internal scratch']
  %s0 = inlined_call_operand.vmem [shape: f32[8,11], index: 0, kind: input, shape index: {}]
  %s1 = inlined_call_operand.vmem [shape: f32[11,128], index: 1, kind: input, shape index: {}]
  %s2 = inlined_call_operand.vmem [shape: f32[1,128], index: 2, kind: input, shape index: {}]
  %s3 = inlined_call_operand.vmem [shape: f32[128,3], index: 3, kind: input, shape index: {}]
  %s4 = inlined_call_operand.vmem [shape: f32[1,3], index: 4, kind: input, shape index: {}]
  %s5 = inlined_call_operand.vmem [shape: f32[8,3], index: 5, kind: output, shape index: {}]
  %s6 = sld [smem:[#allocation0]]
  $region30: #{tpu_custom_call.1} parent=0
    _
  %s8 = ssub.s32 1, %s6
  %s9 = scalar_select 0, %s8, %s6
  // Predicated region
  $region2: #{tpu_custom_call.1} parent=0 // pred_check
    _
  $region3: #{tpu_custom_call.1} parent=0 // pred_check_branch
    %11 = sbr.rel (0) target = $region5
  $region4: #{tpu_custom_call.1} parent=0 // pred_region
    _
  $region5: #{tpu_custom_call.1} parent=0 // pred_fallthru
    _
  // Predicated region
  $region6: #{tpu_custom_call.1} parent=0 // pred_check
    _
  $region7: #{tpu_custom_call.1} parent=0 // pred_check_branch
    %13 = sbr.rel (0) target = $region9
  $region8: #{tpu_custom_call.1} parent=0 // pred_region
    _
  $region9: #{tpu_custom_call.1} parent=0 // pred_fallthru
    _
  // Predicated region
  $region10: #{tpu_custom_call.1} parent=0 // pred_check
    _
  $region11: #{tpu_custom_call.1} parent=0 // pred_check_branch
    %15 = sbr.rel (0) target = $region13
  $region12: #{tpu_custom_call.1} parent=0 // pred_region
    _
  $region13: #{tpu_custom_call.1} parent=0 // pred_fallthru
    _
  // Predicated region
  $region14: #{tpu_custom_call.1} parent=0 // pred_check
    _
  $region15: #{tpu_custom_call.1} parent=0 // pred_check_branch
    %17 = sbr.rel (0) target = $region17
  $region16: #{tpu_custom_call.1} parent=0 // pred_region
    _
  $region17: #{tpu_custom_call.1} parent=0 // pred_fallthru
    _
  // Predicated region
  $region18: #{tpu_custom_call.1} parent=0 // pred_check
    _
  $region19: #{tpu_custom_call.1} parent=0 // pred_check_branch
    %19 = sbr.rel (0) target = $region21
  $region20: #{tpu_custom_call.1} parent=0 // pred_region
    _
  $region21: #{tpu_custom_call.1} parent=0 // pred_fallthru
    _
  %v20 = vld [vmem:[%s0] sm:$0xff]
  %v21 = vld [vmem:[%s1] sm:$0xff]
  %v22 = vld [vmem:[%s1 + $0x8] sm:$0x7]
  %v23 = vld [vmem:[%s2] sm:$0x1]
  %v25 = vlaneseq
  %v26 = vshrl.u32 %v25, 7
  %v27 = vsub.s32 0, %v26
  %v28 = vrot.slane %v23, %v27
  %vm30 = vcmask 89088
  %v32 = vsel %vm30, %v20, 0
  %vm34 = vcmask 1042432
  %v36 = vsel %vm34, %v22, 0
  %38 = vmatprep.subr.mxu0 0.0
  %39 = vmatpush1.msra.mxu0 0.0
  %40 = vmatprep.subr.mxu0 0.0
  %41 = vmatpush1.msra.mxu0 0.0
  %42 = vmatprep.subr.mxu0 0.0
  %43 = vmatpush1.msra.mxu0 0.0
  %44 = vmatprep.subr.mxu0 0.0
  %45 = vmatpush1.msra.mxu0 0.0
  %46 = vmatprep.subr.mxu0 0.0
  %47 = vmatpush1.msra.mxu0 0.0
  %48 = vmatprep.subr.mxu0 0.0
  %49 = vmatpush1.msra.mxu0 0.0
  %50 = vmatprep.subr.mxu0 0.0
  %51 = vmatpush1.msra.mxu0 0.0
  %52 = vmatprep.subr.mxu0 0.0
  %53 = vmatpush1.msra.mxu0 0.0
  %54 = vmatprep.subr.mxu0 0.0
  %55 = vmatpush1.msra.mxu0 0.0
  %56 = vmatprep.subr.mxu0 0.0
  %57 = vmatpush1.msra.mxu0 0.0
  %58 = vmatprep.subr.mxu0 0.0
  %59 = vmatpush1.msra.mxu0 0.0
  %60 = vmatprep.subr.mxu0 0.0
  %61 = vmatpush1.msra.mxu0 0.0
  %62 = vmatprep.subr.mxu0 0.0
  %63 = vmatpush1.msra.mxu0 0.0
  %64 = vmatprep.subr.mxu0 0.0
  %65 = vmatpush1.msra.mxu0 0.0
  %66 = vmatprep.subr.mxu0 0.0
  %67 = vmatpush1.msra.mxu0 %v36
  %68 = vmatprep.subr.mxu0 0.0
  %69 = vmatpush1.msra.mxu0 %v21
  %70 = vmatprep.subr.mxu0 0.0
  %71 = vmatpush2.msra.mxu0 0.0
  %72 = vmatprep.subr.mxu0 0.0
  %73 = vmatpush2.msra.mxu0 0.0
  %74 = vmatprep.subr.mxu0 0.0
  %75 = vmatpush2.msra.mxu0 0.0
  %76 = vmatprep.subr.mxu0 0.0
  %77 = vmatpush2.msra.mxu0 0.0
  %78 = vmatprep.subr.mxu0 0.0
  %79 = vmatpush2.msra.mxu0 0.0
  %80 = vmatprep.subr.mxu0 0.0
  %81 = vmatpush2.msra.mxu0 0.0
  %82 = vmatprep.subr.mxu0 0.0
  %83 = vmatpush2.msra.mxu0 0.0
  %84 = vmatprep.subr.mxu0 0.0
  %85 = vmatpush2.msra.mxu0 0.0
  %86 = vmatprep.subr.mxu0 0.0
  %87 = vmatpush2.msra.mxu0 0.0
  %88 = vmatprep.subr.mxu0 0.0
  %89 = vmatpush2.msra.mxu0 0.0
  %90 = vmatprep.subr.mxu0 0.0
  %91 = vmatpush2.msra.mxu0 0.0
  %92 = vmatprep.subr.mxu0 0.0
  %93 = vmatpush2.msra.mxu0 0.0
  %94 = vmatprep.subr.mxu0 0.0
  %95 = vmatpush2.msra.mxu0 0.0
  %96 = vmatprep.subr.mxu0 0.0
  %97 = vmatpush2.msra.mxu0 0.0
  %98 = vmatprep.subr.mxu0 0.0
  %99 = vmatpush2.msra.mxu0 0.0
  %100 = vmatprep.subr.mxu0 0.0
  %101 = vmatpush2.msra.mxu0 0.0
  %102 = vmatprep.mubr.f32.mxu0 0.0
  %103 = vmatmul.mubr.f32.gmra.mxu0 %v32
  %v104 = vpop.f32.mrf.mxu0
  %v105 = vadd.f32 %v28, %v104
  %v106 = vpop.f32.mrf.mxu0
  %107 = vdwg.mxu0
  %v108 = vmax.f32 %v105, 0.0
  %v109 = vld [vmem:[%s3] sm:$0xff]
  %v110 = vld [vmem:[%s3 + $0x8] sm:$0xff]
  %v111 = vld [vmem:[%s3 + $0x10] sm:$0xff]
  %v112 = vld [vmem:[%s3 + $0x18] sm:$0xff]
  %v113 = vld [vmem:[%s3 + $0x20] sm:$0xff]
  %v114 = vld [vmem:[%s3 + $0x28] sm:$0xff]
  %v115 = vld [vmem:[%s3 + $0x30] sm:$0xff]
  %v116 = vld [vmem:[%s3 + $0x38] sm:$0xff]
  %v117 = vld [vmem:[%s3 + $0x40] sm:$0xff]
  %v118 = vld [vmem:[%s3 + $0x48] sm:$0xff]
  %v119 = vld [vmem:[%s3 + $0x50] sm:$0xff]
  %v120 = vld [vmem:[%s3 + $0x58] sm:$0xff]
  %v121 = vld [vmem:[%s3 + $0x60] sm:$0xff]
  %v122 = vld [vmem:[%s3 + $0x68] sm:$0xff]
  %v123 = vld [vmem:[%s3 + $0x70] sm:$0xff]
  %v124 = vld [vmem:[%s3 + $0x78] sm:$0xff]
  %v125 = vld [vmem:[%s4] sm:$0x1]
  %v127 = vlaneseq
  %v128 = vshrl.u32 %v127, 7
  %v129 = vsub.s32 0, %v128
  %v130 = vrot.slane %v125, %v129
  %132 = vmatprep.subr.mxu0 0.0
  %133 = vmatpush1.msra.mxu0 %v124
  %134 = vmatprep.subr.mxu0 0.0
  %135 = vmatpush1.msra.mxu0 %v123
  %136 = vmatprep.subr.mxu0 0.0
  %137 = vmatpush1.msra.mxu0 %v122
  %138 = vmatprep.subr.mxu0 0.0
  %139 = vmatpush1.msra.mxu0 %v121
  %140 = vmatprep.subr.mxu0 0.0
  %141 = vmatpush1.msra.mxu0 %v120
  %142 = vmatprep.subr.mxu0 0.0
  %143 = vmatpush1.msra.mxu0 %v119
  %144 = vmatprep.subr.mxu0 0.0
  %145 = vmatpush1.msra.mxu0 %v118
  %146 = vmatprep.subr.mxu0 0.0
  %147 = vmatpush1.msra.mxu0 %v117
  %148 = vmatprep.subr.mxu0 0.0
  %149 = vmatpush1.msra.mxu0 %v116
  %150 = vmatprep.subr.mxu0 0.0
  %151 = vmatpush1.msra.mxu0 %v115
  %152 = vmatprep.subr.mxu0 0.0
  %153 = vmatpush1.msra.mxu0 %v114
  %154 = vmatprep.subr.mxu0 0.0
  %155 = vmatpush1.msra.mxu0 %v113
  %156 = vmatprep.subr.mxu0 0.0
  %157 = vmatpush1.msra.mxu0 %v112
  %158 = vmatprep.subr.mxu0 0.0
  %159 = vmatpush1.msra.mxu0 %v111
  %160 = vmatprep.subr.mxu0 0.0
  %161 = vmatpush1.msra.mxu0 %v110
  %162 = vmatprep.subr.mxu0 0.0
  %163 = vmatpush1.msra.mxu0 %v109
  %164 = vmatprep.subr.mxu0 0.0
  %165 = vmatpush2.msra.mxu0 0.0
  %166 = vmatprep.subr.mxu0 0.0
  %167 = vmatpush2.msra.mxu0 0.0
  %168 = vmatprep.subr.mxu0 0.0
  %169 = vmatpush2.msra.mxu0 0.0
  %170 = vmatprep.subr.mxu0 0.0
  %171 = vmatpush2.msra.mxu0 0.0
  %172 = vmatprep.subr.mxu0 0.0
  %173 = vmatpush2.msra.mxu0 0.0
  %174 = vmatprep.subr.mxu0 0.0
  %175 = vmatpush2.msra.mxu0 0.0
  %176 = vmatprep.subr.mxu0 0.0
  %177 = vmatpush2.msra.mxu0 0.0
  %178 = vmatprep.subr.mxu0 0.0
  %179 = vmatpush2.msra.mxu0 0.0
  %180 = vmatprep.subr.mxu0 0.0
  %181 = vmatpush2.msra.mxu0 0.0
  %182 = vmatprep.subr.mxu0 0.0
  %183 = vmatpush2.msra.mxu0 0.0
  %184 = vmatprep.subr.mxu0 0.0
  %185 = vmatpush2.msra.mxu0 0.0
  %186 = vmatprep.subr.mxu0 0.0
  %187 = vmatpush2.msra.mxu0 0.0
  %188 = vmatprep.subr.mxu0 0.0
  %189 = vmatpush2.msra.mxu0 0.0
  %190 = vmatprep.subr.mxu0 0.0
  %191 = vmatpush2.msra.mxu0 0.0
  %192 = vmatprep.subr.mxu0 0.0
  %193 = vmatpush2.msra.mxu0 0.0
  %194 = vmatprep.subr.mxu0 0.0
  %195 = vmatpush2.msra.mxu0 0.0
  %196 = vmatprep.mubr.f32.mxu0 0.0
  %197 = vmatmul.mubr.f32.gmra.mxu0 %v108
  %v198 = vpop.f32.mrf.mxu0
  %v199 = vadd.f32 %v130, %v198
  %v200 = vpop.f32.mrf.mxu0
  %201 = vdwg.mxu0
  %vm202 = vcmask 23552
  %203 = vst.msk [vmem:[%s5] sm:$0xff] %vm202, %v199
  // Predicated region
  $region22: #{tpu_custom_call.1} parent=0 // pred_check
    _
  $region23: #{tpu_custom_call.1} parent=0 // pred_check_branch
    %205 = sbr.rel (0) target = $region25
  $region24: #{tpu_custom_call.1} parent=0 // pred_region
    _
  $region25: #{tpu_custom_call.1} parent=0 // pred_fallthru
    _
  // Predicated region
  $region26: #{tpu_custom_call.1} parent=0 // pred_check
    _
  $region27: #{tpu_custom_call.1} parent=0 // pred_check_branch
    %207 = sbr.rel (0) target = $region29
  $region28: #{tpu_custom_call.1} parent=0 // pred_region
    _
  $region29: #{tpu_custom_call.1} parent=0 // pred_fallthru
    _

</llo_original>
